<compile_context>
chip_gen: v7x
topology: tpu7x:2x2x1
jax: 0.10.0
libtpu: 0.0.40
codegen_flags: <defaults>
</compile_context>

<pallas_src>
import math

import jax
import jax.numpy as jnp
from jax.experimental import pallas as pl
from jax.experimental.pallas import tpu as pltpu


def sage_gcn_kernel(cur_ref, neigh_ref, w_ref, out_ref):
    # cur_ref:   (tn, D)        current-node features
    # neigh_ref: (tn, K*D)      K neighbor features, flattened along lanes
    # w_ref:     (2*D, H)       bf16 fused weights [W1/K ; W2], VMEM resident
    # out_ref:   (tn, H)
    D = cur_ref.shape[1]
    K = neigh_ref.shape[1] // D

    # Neighbor sum: K unrolled, 128-aligned lane slices -> pure VPU adds,
    # accumulated in f32 (no cross-sublane / XLU work).
    neigh_sum = neigh_ref[:, 0:D].astype(jnp.float32)
    for k in range(1, K):                              # K static -> unrolled
        neigh_sum = neigh_sum + neigh_ref[:, k * D:(k + 1) * D].astype(jnp.float32)

    # Two bf16 MXU matmuls into one f32 accumulator (no concat temp).
    # The 1/K mean scale is already folded into w_ref[:D].
    y = jnp.dot(neigh_sum.astype(jnp.bfloat16), w_ref[0:D, :],
                preferred_element_type=jnp.float32)
    y = y + jnp.dot(cur_ref[...].astype(jnp.bfloat16), w_ref[D:2 * D, :],
                    preferred_element_type=jnp.float32)

    # aggr_type == 'sum' is the add above; ReLU epilogue in f32.
    out_ref[...] = jnp.maximum(y, 0.0).astype(out_ref.dtype)


def _vmem_capacity_bytes():
    """Physical VMEM of the current chip; conservative (v7x) fallback."""
    try:
        return int(pltpu.get_tpu_info().vmem_capacity_bytes)
    except Exception:
        return 64 * 1024 * 1024


def _pick_node_tile(N, K, D, H, requested, vmem_budget_bytes, min_grid_steps=2):
    """Largest node tile <= requested that divides N, is sublane-aligned,
    fits the VMEM budget (including in-kernel temporaries), and -- when
    possible -- leaves >= min_grid_steps grid steps so both v7x TCs get work."""

    def footprint(t):
        io = 2 * (t * K * D * 4 + t * D * 4 + t * H * 4)   # double-buffered f32 I/O tiles
        w = 2 * (2 * D) * H * 2                            # bf16 fused weights (2 bufs)
        temps = t * D * 4 + 2 * (t * D * 2) + t * H * 4    # neigh_sum f32, bf16 casts, y f32
        return io + w + temps

    def ok(t):
        return t >= 8 and N % t == 0 and t % 8 == 0 and footprint(t) <= vmem_budget_bytes

    cap = max(8, min(requested, N))
    # First pass prefers tiles that keep >= min_grid_steps grid steps.
    for upper in (min(cap, max(8, N // min_grid_steps)), cap):
        t = (upper // 8) * 8
        while t >= 8:
            if ok(t):
                return t
            t -= 8
    # Fallback: single full-extent block (footprint-checked where possible).
    if footprint(N) <= vmem_budget_bytes or N % 8 != 0:
        # TODO(synk): pad N / ragged last tile instead of one oversized block.
        return N
    return 8


def sage_gcn_forward(cur_features, neighbor_features, weights1, weights2,
                     *, node_tile=1024):
    """cur_features: (N, D); neighbor_features: (N, K, D); weights: (D, H)."""
    N, D = cur_features.shape
    _, K, _ = neighbor_features.shape
    H = weights1.shape[1]

    # Generation-aware VMEM budgeting (v5e/v6e: 128 MiB phys, v7x: 64 MiB).
    vmem_cap = _vmem_capacity_bytes()
    vmem_limit = int(vmem_cap * 0.75)          # scoped limit handed to Mosaic
    vmem_budget = int(vmem_cap * 0.60)         # picker budget (headroom kept)

    tn = _pick_node_tile(N, K, D, H, node_tile, vmem_budget)
    grid = (N // tn,)

    # One-time parameter transform: fold 1/K (mean) into W1 and fuse both
    # projections into a single (2D, H) bf16 weight matrix.
    w_fused = jnp.concatenate(
        [weights1 * jnp.float32(1.0 / K), weights2], axis=0).astype(jnp.bfloat16)

    # Free contiguous reshape (no extra HBM pass, unlike a transpose):
    # neighbors become (N, K*D) so each node tile is a lane-dense slab.
    neigh_flat = neighbor_features.reshape(N, K * D)

    return pl.pallas_call(
        sage_gcn_kernel,
        out_shape=jax.ShapeDtypeStruct((N, H), jnp.float32),
        grid_spec=pltpu.PrefetchScalarGridSpec(
            num_scalar_prefetch=0,
            grid=grid,
            in_specs=[
                pl.BlockSpec((tn, D), lambda i: (i, 0)),        # cur
                pl.BlockSpec((tn, K * D), lambda i: (i, 0)),    # neighbors (flat)
                pl.BlockSpec((2 * D, H), lambda i: (0, 0)),     # fused weights, resident
            ],
            out_specs=pl.BlockSpec((tn, H), lambda i: (i, 0)),
        ),
        compiler_params=pltpu.CompilerParams(
            dimension_semantics=("parallel",),
            vmem_limit_bytes=vmem_limit),
    )(cur_features, neigh_flat, w_fused)


def xavier_uniform(key, fan_in, fan_out, dtype=jnp.float32):
    # matches nn.init.xavier_uniform_ (gain=1)
    bound = math.sqrt(6.0 / (fan_in + fan_out))
    return jax.random.uniform(key, (fan_in, fan_out), dtype,
                              minval=-bound, maxval=bound)


if __name__ == "__main__":
    # Modest but MXU/lane-friendly shapes: D = H = 128 (lane-dense tiles),
    # N = 512 -> tile picker chooses 256 => 2 grid steps (both v7x TCs busy).
    N, K, D, H = 512, 4, 128, 128

    key = jax.random.PRNGKey(0)
    k_cur, k_nei, k_w1, k_w2 = jax.random.split(key, 4)

    cur_features = jax.random.normal(k_cur, (N, D), jnp.float32)
    neighbor_features = jax.random.normal(k_nei, (N, K, D), jnp.float32)

    # deterministic parameter init (xavier uniform, as in SageGCN.init_params)
    weights1 = xavier_uniform(k_w1, D, H)
    weights2 = xavier_uniform(k_w2, D, H)

    out = sage_gcn_forward(cur_features, neighbor_features, weights1, weights2)
    out = jax.block_until_ready(out)
    assert out.shape == (N, H)

    # (a) tight check against a reference mirroring the kernel's bf16 MXU path
    ref_bf16 = jnp.maximum(
        jnp.dot(neighbor_features.sum(axis=1).astype(jnp.bfloat16),
                (weights1 / K).astype(jnp.bfloat16),
                preferred_element_type=jnp.float32)
        + jnp.dot(cur_features.astype(jnp.bfloat16),
                  weights2.astype(jnp.bfloat16),
                  preferred_element_type=jnp.float32), 0.0)
    assert jnp.allclose(out, ref_bf16, atol=5e-3, rtol=5e-3)

    # (b) loose check against the original f32 module semantics
    #     (bf16 MXU rounding only; error grows mildly with K and D)
    ref_f32 = jnp.maximum(
        neighbor_features.mean(axis=1) @ weights1 + cur_features @ weights2, 0.0)
    assert jnp.allclose(out, ref_f32, atol=5e-2, rtol=5e-2)

    print("KERNEL_OK")
</pallas_src>

<mosaic_0001>
module attributes {stable_mosaic.version = 11 : i64} {
  func.func @sage_gcn_kernel(%arg0: i32, %arg1: memref<256x128xf32, #tpu.memory_space<vmem>>, %arg2: memref<256x512xf32, #tpu.memory_space<vmem>>, %arg3: memref<256x128xbf16, #tpu.memory_space<vmem>>, %arg4: memref<256x128xf32, #tpu.memory_space<vmem>>) attributes {dimension_semantics = [#tpu.dimension_semantics<parallel>], iteration_bounds = array<i64: 2>, scalar_prefetch = 0 : i64, scratch_operands = 0 : i64, tpu.core_type = #tpu.core_type<tc>, window_params = [{transform_indices = @transform_0, window_bounds = array<i64: 256, 128>}, {transform_indices = @transform_1, window_bounds = array<i64: 256, 512>}, {pipeline_mode = #tpu.pipeline_mode<synchronous>, transform_indices = @transform_2, window_bounds = array<i64: 256, 128>}, {transform_indices = @transform_3, window_bounds = array<i64: 256, 128>}]} {
    %c0 = arith.constant 0 : index
    %c0_0 = arith.constant 0 : index
    %0 = vector.load %arg2[%c0, %c0_0] : memref<256x512xf32, #tpu.memory_space<vmem>>, vector<256x128xf32>
    %c0_1 = arith.constant 0 : index
    %c128 = arith.constant 128 : index
    %1 = vector.load %arg2[%c0_1, %c128] : memref<256x512xf32, #tpu.memory_space<vmem>>, vector<256x128xf32>
    %2 = arith.addf %0, %1 : vector<256x128xf32>
    %c0_2 = arith.constant 0 : index
    %c256 = arith.constant 256 : index
    %3 = vector.load %arg2[%c0_2, %c256] : memref<256x512xf32, #tpu.memory_space<vmem>>, vector<256x128xf32>
    %4 = arith.addf %2, %3 : vector<256x128xf32>
    %c0_3 = arith.constant 0 : index
    %c384 = arith.constant 384 : index
    %5 = vector.load %arg2[%c0_3, %c384] : memref<256x512xf32, #tpu.memory_space<vmem>>, vector<256x128xf32>
    %6 = arith.addf %4, %5 : vector<256x128xf32>
    %7 = arith.truncf %6 : vector<256x128xf32> to vector<256x128xbf16>
    %c0_4 = arith.constant 0 : index
    %c0_5 = arith.constant 0 : index
    %8 = vector.load %arg3[%c0_4, %c0_5] : memref<256x128xbf16, #tpu.memory_space<vmem>>, vector<128x128xbf16>
    %cst = arith.constant dense<0.000000e+00> : vector<256x128xf32>
    %9 = tpu.matmul %7, %8, %cst {dimension_numbers = #tpu.dot_dimension_numbers<[1], [0], [0], [1], [0, 0, 1, 1], [], []>} : vector<256x128xbf16>, vector<128x128xbf16>, vector<256x128xf32> -> vector<256x128xf32>
    %c0_6 = arith.constant 0 : index
    %c0_7 = arith.constant 0 : index
    %10 = vector.load %arg1[%c0_6, %c0_7] : memref<256x128xf32, #tpu.memory_space<vmem>>, vector<256x128xf32>
    %11 = arith.truncf %10 : vector<256x128xf32> to vector<256x128xbf16>
    %c128_8 = arith.constant 128 : index
    %c0_9 = arith.constant 0 : index
    %12 = vector.load %arg3[%c128_8, %c0_9] : memref<256x128xbf16, #tpu.memory_space<vmem>>, vector<128x128xbf16>
    %cst_10 = arith.constant dense<0.000000e+00> : vector<256x128xf32>
    %13 = tpu.matmul %11, %12, %cst_10 {dimension_numbers = #tpu.dot_dimension_numbers<[1], [0], [0], [1], [0, 0, 1, 1], [], []>} : vector<256x128xbf16>, vector<128x128xbf16>, vector<256x128xf32> -> vector<256x128xf32>
    %14 = arith.addf %9, %13 : vector<256x128xf32>
    %cst_11 = arith.constant 0.000000e+00 : f32
    %15 = vector.broadcast %cst_11 : f32 to vector<256x128xf32>
    %16 = arith.maximumf %14, %15 : vector<256x128xf32>
    %c0_12 = arith.constant 0 : index
    %c0_13 = arith.constant 0 : index
    %17 = vector.load %arg4[%c0_12, %c0_13] : memref<256x128xf32, #tpu.memory_space<vmem>>, vector<256x128xf32>
    tpu.vector_store %arg4[%c0_12, %c0_13], %16 {strides = array<i32>} : memref<256x128xf32, #tpu.memory_space<vmem>>, vector<256x128xf32>,
    return
  }
  func.func @transform_0(%arg0: i32) -> (i32, i32) {
    %c0_i32 = arith.constant 0 : i32
    %c0_i32_0 = arith.constant 0 : i32
    return %arg0, %c0_i32 : i32, i32
  }
  func.func @transform_1(%arg0: i32) -> (i32, i32) {
    %c0_i32 = arith.constant 0 : i32
    %c0_i32_0 = arith.constant 0 : i32
    return %arg0, %c0_i32 : i32, i32
  }
  func.func @transform_2(%arg0: i32) -> (i32, i32) {
    %c0_i32 = arith.constant 0 : i32
    %c0_i32_0 = arith.constant 0 : i32
    %c0_i32_1 = arith.constant 0 : i32
    return %c0_i32, %c0_i32_0 : i32, i32
  }
  func.func @transform_3(%arg0: i32) -> (i32, i32) {
    %c0_i32 = arith.constant 0 : i32
    %c0_i32_0 = arith.constant 0 : i32
    return %arg0, %c0_i32 : i32, i32
  }
}

</mosaic_0001>

<llo_original>
// kernel: tpu_custom_call.1
$region0: #{tpu_custom_call.1}
  #allocation0 [shape = 'u32[]', space=smem, size = 0x4, offset = 0x4, fixed_abs, tag = 'smem constant byte address 0x4 - core index']
  #allocation1 [shape = 'u32[144,128]{1,0:T(1,128)}', space=vmem, size = 0x12000, scoped, tag = 'internal scratch']
  %s0 = inlined_call_operand.hbm [shape: f32[512,128], index: 0, kind: input, shape index: {}]
  %s1 = inlined_call_operand.hbm [shape: f32[512,512], index: 1, kind: input, shape index: {}]
  %s2 = inlined_call_operand.hbm [shape: bf16[256,128], index: 2, kind: input, shape index: {}]
  %s3 = inlined_call_operand.hbm [shape: f32[512,128], index: 3, kind: output, shape index: {}]
  %s4 = sld [smem:[#allocation0]]
  $region57: #{tpu_custom_call.1} parent=0
    _
  %s6 = ssub.s32 1, %s4
  %s7 = scalar_select 0, %s6, %s4
  $region1: #{tpu_custom_call.1} parent=0
    #allocation2 [shape = 'u8[262144]{0}', space=vmem, size = 0x40000, scoped, tag = 'input window, operand 0']
    #allocation3 [shape = 's32[2]{0}', space=sflag, size = 0x8, scoped, tag = 'scoped memory for tpu_custom_call.1']
    #allocation4 [shape = 's32[2]{0}', space=sflag, size = 0x8, scoped, tag = 'scoped memory for tpu_custom_call.1']
    #allocation5 [shape = 'u8[1048576]{0}', space=vmem, size = 0x100000, scoped, tag = 'input window, operand 1']
    #allocation6 [shape = 's32[2]{0}', space=sflag, size = 0x8, scoped, tag = 'scoped memory for tpu_custom_call.1']
    #allocation7 [shape = 'u8[65536]{0}', space=vmem, size = 0x10000, scoped, tag = 'input window, operand 2, single buffered']
    #allocation8 [shape = 'u8[262144]{0}', space=vmem, size = 0x40000, scoped, tag = 'output window, operand 0']
    %8 = vsyncpa [#allocation3], 0
    %s9 = scalar_lea.sflag [#allocation3], 1
    %10 = vsyncpa %s9, 0
    %11 = vsyncpa [#allocation6], 0
    %s12 = scalar_lea.sflag [#allocation6], 1
    %13 = vsyncpa %s12, 0
    %14 = vsyncpa [#allocation4], 0
    %s15 = scalar_lea.sflag [#allocation4], 1
    %16 = vsyncpa %s15, 0
    loop: start=0, step=1, limit=4
    $region2: #{tpu_custom_call.1} parent=1 // loop_pre_header
      _
    $region3: #{tpu_custom_call.1} parent=1 // loop_header
      %s18 = sphi 0, %s22
      %p19 = scmp.ge.s32.totalorder %s18, 4
      %s28 = sphi 0, %s30
      %s31 = sphi 0, %s28
      %s32 = sphi 0, %s31
      %s48 = sphi 0, %s32
      %s54 = sphi 0, %s56
      %s57 = sphi 0, %s54
      %s58 = sphi 0, %s57
      %s74 = sphi 0, %s58
      %s78 = sphi 0, %s78
      %s80 = sphi 0, %s78
      %s81 = sphi 0, %s80
      %s95 = sphi 0, %s81
      %s101 = sphi 0, %s103
      %s104 = sphi 0, %s101
      %s105 = sphi 0, %s104
      %s121 = sphi 0, %s105
    $region4: #{tpu_custom_call.1} parent=1 // loop_header_branch
      %21 = sbr.rel (%p19) target = $region8
    $region5: #{tpu_custom_call.1} parent=1 // loop_body
      %s23 = ssub.s32 %s18, 1
      %s24 = ssub.s32 %s18, 2
      %s25 = sadd.s32 %s18, 1
      %s26 = ssub.s32 %s18, %s25
      %p27 = scmp.eq.s32.totalorder %s26, 0
      %s29 = sadd.s32 %s28, 1
      %s30 = scalar_select %p27, %s28, %s29
      %p33 = pneg %p27
      %p34 = scmp.eq.s32.totalorder %s18, 1
      %p35 = por %p33, %p34
      %p36 = scmp.ne.s32.totalorder %s28, %s31
      %p37 = scmp.eq.s32.totalorder %s18, 0
      %p38 = por %p36, %p37
      %p39 = scmp.ne.s32.totalorder %s28, %s31
      %p40 = scmp.eq.s32.totalorder %s23, 1
      %p41 = por %p39, %p40
      %p42 = scmp.ne.s32.totalorder %s31, %s32
      %p43 = scmp.eq.s32.totalorder %s23, 0
      %p44 = por %p42, %p43
      %p45 = scmp.ne.s32.totalorder %s31, %s32
      %p46 = scmp.eq.s32.totalorder %s24, 1
      %p47 = por %p45, %p46
      %p49 = scmp.ne.s32.totalorder %s32, %s48
      %p50 = scmp.eq.s32.totalorder %s24, 0
      %p51 = por %p49, %p50
      %s52 = ssub.s32 %s18, %s25
      %p53 = scmp.eq.s32.totalorder %s52, 0
      %s55 = sadd.s32 %s54, 1
      %s56 = scalar_select %p53, %s54, %s55
      %p59 = pneg %p53
      %p60 = scmp.eq.s32.totalorder %s18, 1
      %p61 = por %p59, %p60
      %p62 = scmp.ne.s32.totalorder %s54, %s57
      %p63 = scmp.eq.s32.totalorder %s18, 0
      %p64 = por %p62, %p63
      %p65 = scmp.ne.s32.totalorder %s54, %s57
      %p66 = scmp.eq.s32.totalorder %s23, 1
      %p67 = por %p65, %p66
      %p68 = scmp.ne.s32.totalorder %s57, %s58
      %p69 = scmp.eq.s32.totalorder %s23, 0
      %p70 = por %p68, %p69
      %p71 = scmp.ne.s32.totalorder %s57, %s58
      %p72 = scmp.eq.s32.totalorder %s24, 1
      %p73 = por %p71, %p72
      %p75 = scmp.ne.s32.totalorder %s58, %s74
      %p76 = scmp.eq.s32.totalorder %s24, 0
      %p77 = por %p75, %p76
      %s79 = sadd.s32 %s78, 1
      %p82 = scmp.eq.s32.totalorder %s18, 1
      %p83 = scmp.ne.s32.totalorder %s78, %s80
      %p84 = scmp.eq.s32.totalorder %s18, 0
      %p85 = por %p83, %p84
      %p86 = scmp.ne.s32.totalorder %s78, %s80
      %p87 = scmp.eq.s32.totalorder %s23, 1
      %p88 = por %p86, %p87
      %p89 = scmp.ne.s32.totalorder %s80, %s81
      %p90 = scmp.eq.s32.totalorder %s23, 0
      %p91 = por %p89, %p90
      %p92 = scmp.ne.s32.totalorder %s80, %s81
      %p93 = scmp.eq.s32.totalorder %s24, 1
      %p94 = por %p92, %p93
      %p96 = scmp.ne.s32.totalorder %s81, %s95
      %p97 = scmp.eq.s32.totalorder %s24, 0
      %p98 = por %p96, %p97
      %s99 = ssub.s32 %s18, %s25
      %p100 = scmp.eq.s32.totalorder %s99, 0
      %s102 = sadd.s32 %s101, 1
      %s103 = scalar_select %p100, %s101, %s102
      %p106 = pneg %p100
      %p107 = scmp.eq.s32.totalorder %s18, 1
      %p108 = por %p106, %p107
      %p109 = scmp.ne.s32.totalorder %s101, %s104
      %p110 = scmp.eq.s32.totalorder %s18, 0
      %p111 = por %p109, %p110
      %p112 = scmp.ne.s32.totalorder %s101, %s104
      %p113 = scmp.eq.s32.totalorder %s23, 1
      %p114 = por %p112, %p113
      %p115 = scmp.ne.s32.totalorder %s104, %s105
      %p116 = scmp.eq.s32.totalorder %s23, 0
      %p117 = por %p115, %p116
      %p118 = scmp.ne.s32.totalorder %s104, %s105
      %p119 = scmp.eq.s32.totalorder %s24, 1
      %p120 = por %p118, %p119
      %p122 = scmp.ne.s32.totalorder %s105, %s121
      %p123 = scmp.eq.s32.totalorder %s24, 0
      %p124 = por %p122, %p123
      %p125 = scmp.le.s32.totalorder 1, %s18
      %p126 = scmp.lt.s32.totalorder %s18, 3
      %p127 = pnand %p125, %p126
      %p128 = pneg %p127
      // Predicated region
      $region9: #{tpu_custom_call.1} parent=5 // pred_check
        _
      $region10: #{tpu_custom_call.1} parent=5 // pred_check_branch
        %130 = sbr.rel (%p127) target = $region12
      $region11: #{tpu_custom_call.1} parent=5 // pred_region
        %s131 = ssub.s32 %s18, 1
        // Predicated region
        $region13: #{tpu_custom_call.1} parent=11 // pred_check
          %p132 = pneg %p91
        $region14: #{tpu_custom_call.1} parent=11 // pred_check_branch
          %134 = sbr.rel (%p132) target = $region16
        $region15: #{tpu_custom_call.1} parent=11 // pred_region
          %s136 = ssub.s32 2048, 2048
          %137 = vsyncadd [#allocation6], %s136
          %s138 = sshll.u32 [#allocation7], 4
          %s139 = int_to_ptr.vmem [resolvable:$true] %s138
          %144 = dma.hbm_to_vmem [thread:$0]  %s2, 2048, %s139, [#allocation6], 64, 64, 4
        $region16: #{tpu_custom_call.1} parent=11 // pred_fallthru
          _
      $region12: #{tpu_custom_call.1} parent=5 // pred_fallthru
        _
      %p145 = scmp.lt.s32.totalorder %s18, 2
      // Predicated region
      $region17: #{tpu_custom_call.1} parent=5 // pred_check
        %p146 = pneg %p145
      $region18: #{tpu_custom_call.1} parent=5 // pred_check_branch
        %148 = sbr.rel (%p146) target = $region20
      $region19: #{tpu_custom_call.1} parent=5 // pred_region
        // Predicated region
        $region21: #{tpu_custom_call.1} parent=19 // pred_check
          %p149 = pneg %p38
        $region22: #{tpu_custom_call.1} parent=19 // pred_check_branch
          %151 = sbr.rel (%p149) target = $region24
        $region23: #{tpu_custom_call.1} parent=19 // pred_region
          %s152 = sand.u32 %s28, 1
          %s153 = scalar_lea.sflag [#allocation3], %s152
          %s154 = sand.u32 %s28, 1
          %s155 = smul.addr %s154, 256
          %s156 = scalar_lea.vmem [#allocation2], %s155
          %s157 = smul.u32 32, %s18
          %s159 = ssub.s32 4096, 4096
          %160 = vsyncadd %s153, %s159
          %s161 = smul.addr %s157, 128
          %s162 = scalar_lea.hbm %s0, %s161
          %s163 = sshll.u32 %s156, 4
          %s164 = int_to_ptr.vmem [resolvable:$true] %s163
          %169 = dma.hbm_to_vmem [thread:$0]  %s162, 4096, %s164, %s153, 128, 128, 8
        $region24: #{tpu_custom_call.1} parent=19 // pred_fallthru
          _
        // Predicated region
        $region25: #{tpu_custom_call.1} parent=19 // pred_check
          %p170 = pneg %p64
        $region26: #{tpu_custom_call.1} parent=19 // pred_check_branch
          %172 = sbr.rel (%p170) target = $region28
        $region27: #{tpu_custom_call.1} parent=19 // pred_region
          %s173 = sand.u32 %s18, 1
          %s174 = scalar_lea.sflag [#allocation6], %s173
          %s175 = sand.u32 %s54, 1
          %s176 = smul.addr %s175, 1024
          %s177 = scalar_lea.vmem [#allocation5], %s176
          %s178 = smul.u32 32, %s18
          %s180 = ssub.s32 16384, 16384
          %181 = vsyncadd %s174, %s180
          %s182 = smul.addr %s178, 4
          %s183 = smul.addr %s182, 128
          %s184 = scalar_lea.hbm %s1, %s183
          %s185 = sshll.u32 %s177, 4
          %s186 = int_to_ptr.vmem [resolvable:$true] %s185
          %191 = dma.hbm_to_vmem [thread:$0]  %s184, 16384, %s186, %s174, 512, 512, 32
        $region28: #{tpu_custom_call.1} parent=19 // pred_fallthru
          _
      $region20: #{tpu_custom_call.1} parent=5 // pred_fallthru
        _
      %p192 = scmp.le.s32.totalorder 1, %s18
      %p193 = scmp.lt.s32.totalorder %s18, 3
      %p194 = pnand %p192, %p193
      %p195 = pneg %p194
      // Predicated region
      $region29: #{tpu_custom_call.1} parent=5 // pred_check
        _
      $region30: #{tpu_custom_call.1} parent=5 // pred_check_branch
        %197 = sbr.rel (%p194) target = $region32
      $region31: #{tpu_custom_call.1} parent=5 // pred_region
        %s198 = ssub.s32 %s18, 1
        %s199 = sand.u32 %s31, 1
        %s200 = scalar_lea.sflag [#allocation3], %s199
        %s201 = sand.u32 %s31, 1
        %s202 = smul.addr %s201, 256
        %s203 = scalar_lea.vmem [#allocation2], %s202
        // Predicated region
        $region33: #{tpu_custom_call.1} parent=31 // pred_check
          %p204 = pneg %p44
        $region34: #{tpu_custom_call.1} parent=31 // pred_check_branch
          %206 = sbr.rel (%p204) target = $region36
        $region35: #{tpu_custom_call.1} parent=31 // pred_region
          %207 = dma.done %s200, 4096
        $region36: #{tpu_custom_call.1} parent=31 // pred_fallthru
          _
        %s208 = sand.u32 %s23, 1
        %s209 = scalar_lea.sflag [#allocation6], %s208
        %s210 = sand.u32 %s57, 1
        %s211 = smul.addr %s210, 1024
        %s212 = scalar_lea.vmem [#allocation5], %s211
        // Predicated region
        $region37: #{tpu_custom_call.1} parent=31 // pred_check
          %p213 = pneg %p70
        $region38: #{tpu_custom_call.1} parent=31 // pred_check_branch
          %215 = sbr.rel (%p213) target = $region40
        $region39: #{tpu_custom_call.1} parent=31 // pred_region
          %216 = dma.done %s209, 16384
        $region40: #{tpu_custom_call.1} parent=31 // pred_fallthru
          _
        // Predicated region
        $region41: #{tpu_custom_call.1} parent=31 // pred_check
          %p217 = pneg %p91
        $region42: #{tpu_custom_call.1} parent=31 // pred_check_branch
          %219 = sbr.rel (%p217) target = $region44
        $region43: #{tpu_custom_call.1} parent=31 // pred_region
          %220 = dma.done [#allocation6], 2048
        $region44: #{tpu_custom_call.1} parent=31 // pred_fallthru
          _
        %s221 = sand.u32 %s31, 1
        %s222 = scalar_lea.sflag [#allocation3], %s221
        %s223 = sand.u32 %s31, 1
        %s224 = smul.addr %s223, 256
        %s225 = scalar_lea.vmem [#allocation2], %s224
        %p226 = pneg %p44
        %p227 = pneg %p41
        %s228 = sand.u32 %s23, 1
        %s229 = scalar_lea.sflag [#allocation6], %s228
        %s230 = sand.u32 %s57, 1
        %s231 = smul.addr %s230, 1024
        %s232 = scalar_lea.vmem [#allocation5], %s231
        %p233 = pneg %p70
        %p234 = pneg %p67
        %p235 = pneg %p91
        %p236 = pneg %p88
        %p237 = pneg %p117
        %p238 = pneg %p114
        %s239 = sand.u32 %s104, 1
        %s240 = scalar_lea.sflag [#allocation4], %s239
        %s241 = sand.u32 %s104, 1
        %s242 = smul.addr %s241, 256
        %s243 = scalar_lea.vmem [#allocation8], %s242
        %s244 = smul.u32 32, %s23
        %s245 = smul.u32 32, %s23
        %s246 = smul.u32 32, %s23
        %v248 = vld [vmem:[%s212] sm:$0xff]
        %v249 = vld [vmem:[%s212 + $0x20] sm:$0xff]
        %v250 = vld [vmem:[%s212 + $0x40] sm:$0xff]
        %v251 = vld [vmem:[%s212 + $0x60] sm:$0xff]
        %v252 = vld [vmem:[%s212 + $0x80] sm:$0xff]
        %v253 = vld [vmem:[%s212 + $0xa0] sm:$0xff]
        %v254 = vld [vmem:[%s212 + $0xc0] sm:$0xff]
        %v255 = vld [vmem:[%s212 + $0xe0] sm:$0xff]
        %v256 = vld [vmem:[%s212 + $0x100] sm:$0xff]
        %v257 = vld [vmem:[%s212 + $0x120] sm:$0xff]
        %v258 = vld [vmem:[%s212 + $0x140] sm:$0xff]
        %v259 = vld [vmem:[%s212 + $0x160] sm:$0xff]
        %v260 = vld [vmem:[%s212 + $0x180] sm:$0xff]
        %v261 = vld [vmem:[%s212 + $0x1a0] sm:$0xff]
        %v262 = vld [vmem:[%s212 + $0x1c0] sm:$0xff]
        %v263 = vld [vmem:[%s212 + $0x1e0] sm:$0xff]
        %v264 = vld [vmem:[%s212 + $0x200] sm:$0xff]
        %v265 = vld [vmem:[%s212 + $0x220] sm:$0xff]
        %v266 = vld [vmem:[%s212 + $0x240] sm:$0xff]
        %v267 = vld [vmem:[%s212 + $0x260] sm:$0xff]
        %v268 = vld [vmem:[%s212 + $0x280] sm:$0xff]
        %v269 = vld [vmem:[%s212 + $0x2a0] sm:$0xff]
        %v270 = vld [vmem:[%s212 + $0x2c0] sm:$0xff]
        %v271 = vld [vmem:[%s212 + $0x2e0] sm:$0xff]
        %v272 = vld [vmem:[%s212 + $0x300] sm:$0xff]
        %v273 = vld [vmem:[%s212 + $0x320] sm:$0xff]
        %v274 = vld [vmem:[%s212 + $0x340] sm:$0xff]
        %v275 = vld [vmem:[%s212 + $0x360] sm:$0xff]
        %v276 = vld [vmem:[%s212 + $0x380] sm:$0xff]
        %v277 = vld [vmem:[%s212 + $0x3a0] sm:$0xff]
        %v278 = vld [vmem:[%s212 + $0x3c0] sm:$0xff]
        %v279 = vld [vmem:[%s212 + $0x3e0] sm:$0xff]
        %v280 = vld [vmem:[%s212 + $0x8] sm:$0xff]
        %v281 = vld [vmem:[%s212 + $0x28] sm:$0xff]
        %v282 = vld [vmem:[%s212 + $0x48] sm:$0xff]
        %v283 = vld [vmem:[%s212 + $0x68] sm:$0xff]
        %v284 = vld [vmem:[%s212 + $0x88] sm:$0xff]
        %v285 = vld [vmem:[%s212 + $0xa8] sm:$0xff]
        %v286 = vld [vmem:[%s212 + $0xc8] sm:$0xff]
        %v287 = vld [vmem:[%s212 + $0xe8] sm:$0xff]
        %v288 = vld [vmem:[%s212 + $0x108] sm:$0xff]
        %v289 = vld [vmem:[%s212 + $0x128] sm:$0xff]
        %v290 = vld [vmem:[%s212 + $0x148] sm:$0xff]
        %v291 = vld [vmem:[%s212 + $0x168] sm:$0xff]
        %v292 = vld [vmem:[%s212 + $0x188] sm:$0xff]
        %v293 = vld [vmem:[%s212 + $0x1a8] sm:$0xff]
        %v294 = vld [vmem:[%s212 + $0x1c8] sm:$0xff]
        %v295 = vld [vmem:[%s212 + $0x1e8] sm:$0xff]
        %v296 = vld [vmem:[%s212 + $0x208] sm:$0xff]
        %v297 = vld [vmem:[%s212 + $0x228] sm:$0xff]
        %v298 = vld [vmem:[%s212 + $0x248] sm:$0xff]
        %v299 = vld [vmem:[%s212 + $0x268] sm:$0xff]
        %v300 = vld [vmem:[%s212 + $0x288] sm:$0xff]
        %v301 = vld [vmem:[%s212 + $0x2a8] sm:$0xff]
        %v302 = vld [vmem:[%s212 + $0x2c8] sm:$0xff]
        %v303 = vld [vmem:[%s212 + $0x2e8] sm:$0xff]
        %v304 = vld [vmem:[%s212 + $0x308] sm:$0xff]
        %v305 = vld [vmem:[%s212 + $0x328] sm:$0xff]
        %v306 = vld [vmem:[%s212 + $0x348] sm:$0xff]
        %v307 = vld [vmem:[%s212 + $0x368] sm:$0xff]
        %v308 = vld [vmem:[%s212 + $0x388] sm:$0xff]
        %v309 = vld [vmem:[%s212 + $0x3a8] sm:$0xff]
        %v310 = vld [vmem:[%s212 + $0x3c8] sm:$0xff]
        %v311 = vld [vmem:[%s212 + $0x3e8] sm:$0xff]
        %v312 = vadd.f32 %v248, %v280
        %v313 = vadd.f32 %v249, %v281
        %v314 = vadd.f32 %v250, %v282
        %v315 = vadd.f32 %v251, %v283
        %v316 = vadd.f32 %v252, %v284
        %v317 = vadd.f32 %v253, %v285
        %v318 = vadd.f32 %v254, %v286
        %v319 = vadd.f32 %v255, %v287
        %v320 = vadd.f32 %v256, %v288
        %v321 = vadd.f32 %v257, %v289
        %v322 = vadd.f32 %v258, %v290
        %v323 = vadd.f32 %v259, %v291
        %v324 = vadd.f32 %v260, %v292
        %v325 = vadd.f32 %v261, %v293
        %v326 = vadd.f32 %v262, %v294
        %v327 = vadd.f32 %v263, %v295
        %v328 = vadd.f32 %v264, %v296
        %v329 = vadd.f32 %v265, %v297
        %v330 = vadd.f32 %v266, %v298
        %v331 = vadd.f32 %v267, %v299
        %v332 = vadd.f32 %v268, %v300
        %v333 = vadd.f32 %v269, %v301
        %v334 = vadd.f32 %v270, %v302
        %v335 = vadd.f32 %v271, %v303
        %v336 = vadd.f32 %v272, %v304
        %v337 = vadd.f32 %v273, %v305
        %v338 = vadd.f32 %v274, %v306
        %v339 = vadd.f32 %v275, %v307
        %v340 = vadd.f32 %v276, %v308
        %v341 = vadd.f32 %v277, %v309
        %v342 = vadd.f32 %v278, %v310
        %v343 = vadd.f32 %v279, %v311
        %v344 = vld [vmem:[%s212 + $0x10] sm:$0xff]
        %v345 = vld [vmem:[%s212 + $0x30] sm:$0xff]
        %v346 = vld [vmem:[%s212 + $0x50] sm:$0xff]
        %v347 = vld [vmem:[%s212 + $0x70] sm:$0xff]
        %v348 = vld [vmem:[%s212 + $0x90] sm:$0xff]
        %v349 = vld [vmem:[%s212 + $0xb0] sm:$0xff]
        %v350 = vld [vmem:[%s212 + $0xd0] sm:$0xff]
        %v351 = vld [vmem:[%s212 + $0xf0] sm:$0xff]
        %v352 = vld [vmem:[%s212 + $0x110] sm:$0xff]
        %v353 = vld [vmem:[%s212 + $0x130] sm:$0xff]
        %v354 = vld [vmem:[%s212 + $0x150] sm:$0xff]
        %v355 = vld [vmem:[%s212 + $0x170] sm:$0xff]
        %v356 = vld [vmem:[%s212 + $0x190] sm:$0xff]
        %v357 = vld [vmem:[%s212 + $0x1b0] sm:$0xff]
        %v358 = vld [vmem:[%s212 + $0x1d0] sm:$0xff]
        %v359 = vld [vmem:[%s212 + $0x1f0] sm:$0xff]
        %v360 = vld [vmem:[%s212 + $0x210] sm:$0xff]
        %v361 = vld [vmem:[%s212 + $0x230] sm:$0xff]
        %v362 = vld [vmem:[%s212 + $0x250] sm:$0xff]
        %v363 = vld [vmem:[%s212 + $0x270] sm:$0xff]
        %v364 = vld [vmem:[%s212 + $0x290] sm:$0xff]
        %v365 = vld [vmem:[%s212 + $0x2b0] sm:$0xff]
        %v366 = vld [vmem:[%s212 + $0x2d0] sm:$0xff]
        %v367 = vld [vmem:[%s212 + $0x2f0] sm:$0xff]
        %v368 = vld [vmem:[%s212 + $0x310] sm:$0xff]
        %v369 = vld [vmem:[%s212 + $0x330] sm:$0xff]
        %v370 = vld [vmem:[%s212 + $0x350] sm:$0xff]
        %v371 = vld [vmem:[%s212 + $0x370] sm:$0xff]
        %v372 = vld [vmem:[%s212 + $0x390] sm:$0xff]
        %v373 = vld [vmem:[%s212 + $0x3b0] sm:$0xff]
        %v374 = vld [vmem:[%s212 + $0x3d0] sm:$0xff]
        %v375 = vld [vmem:[%s212 + $0x3f0] sm:$0xff]
        %v376 = vadd.f32 %v312, %v344
        %v377 = vadd.f32 %v313, %v345
        %v378 = vadd.f32 %v314, %v346
        %v379 = vadd.f32 %v315, %v347
        %v380 = vadd.f32 %v316, %v348
        %v381 = vadd.f32 %v317, %v349
        %v382 = vadd.f32 %v318, %v350
        %v383 = vadd.f32 %v319, %v351
        %v384 = vadd.f32 %v320, %v352
        %v385 = vadd.f32 %v321, %v353
        %v386 = vadd.f32 %v322, %v354
        %v387 = vadd.f32 %v323, %v355
        %v388 = vadd.f32 %v324, %v356
        %v389 = vadd.f32 %v325, %v357
        %v390 = vadd.f32 %v326, %v358
        %v391 = vadd.f32 %v327, %v359
        %v392 = vadd.f32 %v328, %v360
        %v393 = vadd.f32 %v329, %v361
        %v394 = vadd.f32 %v330, %v362
        %v395 = vadd.f32 %v331, %v363
        %v396 = vadd.f32 %v332, %v364
        %v397 = vadd.f32 %v333, %v365
        %v398 = vadd.f32 %v334, %v366
        %v399 = vadd.f32 %v335, %v367
        %v400 = vadd.f32 %v336, %v368
        %v401 = vadd.f32 %v337, %v369
        %v402 = vadd.f32 %v338, %v370
        %v403 = vadd.f32 %v339, %v371
        %v404 = vadd.f32 %v340, %v372
        %v405 = vadd.f32 %v341, %v373
        %v406 = vadd.f32 %v342, %v374
        %v407 = vadd.f32 %v343, %v375
        %v408 = vld [vmem:[%s212 + $0x18] sm:$0xff]
        %v409 = vld [vmem:[%s212 + $0x38] sm:$0xff]
        %v410 = vld [vmem:[%s212 + $0x58] sm:$0xff]
        %v411 = vld [vmem:[%s212 + $0x78] sm:$0xff]
        %v412 = vld [vmem:[%s212 + $0x98] sm:$0xff]
        %v413 = vld [vmem:[%s212 + $0xb8] sm:$0xff]
        %v414 = vld [vmem:[%s212 + $0xd8] sm:$0xff]
        %v415 = vld [vmem:[%s212 + $0xf8] sm:$0xff]
        %v416 = vld [vmem:[%s212 + $0x118] sm:$0xff]
        %v417 = vld [vmem:[%s212 + $0x138] sm:$0xff]
        %v418 = vld [vmem:[%s212 + $0x158] sm:$0xff]
        %v419 = vld [vmem:[%s212 + $0x178] sm:$0xff]
        %v420 = vld [vmem:[%s212 + $0x198] sm:$0xff]
        %v421 = vld [vmem:[%s212 + $0x1b8] sm:$0xff]
        %v422 = vld [vmem:[%s212 + $0x1d8] sm:$0xff]
        %v423 = vld [vmem:[%s212 + $0x1f8] sm:$0xff]
        %v424 = vld [vmem:[%s212 + $0x218] sm:$0xff]
        %v425 = vld [vmem:[%s212 + $0x238] sm:$0xff]
        %v426 = vld [vmem:[%s212 + $0x258] sm:$0xff]
        %v427 = vld [vmem:[%s212 + $0x278] sm:$0xff]
        %v428 = vld [vmem:[%s212 + $0x298] sm:$0xff]
        %v429 = vld [vmem:[%s212 + $0x2b8] sm:$0xff]
        %v430 = vld [vmem:[%s212 + $0x2d8] sm:$0xff]
        %v431 = vld [vmem:[%s212 + $0x2f8] sm:$0xff]
        %v432 = vld [vmem:[%s212 + $0x318] sm:$0xff]
        %v433 = vld [vmem:[%s212 + $0x338] sm:$0xff]
        %v434 = vld [vmem:[%s212 + $0x358] sm:$0xff]
        %v435 = vld [vmem:[%s212 + $0x378] sm:$0xff]
        %v436 = vld [vmem:[%s212 + $0x398] sm:$0xff]
        %v437 = vld [vmem:[%s212 + $0x3b8] sm:$0xff]
        %v438 = vld [vmem:[%s212 + $0x3d8] sm:$0xff]
        %v439 = vld [vmem:[%s212 + $0x3f8] sm:$0xff]
        %v440 = vadd.f32 %v376, %v408
        %v441 = vadd.f32 %v377, %v409
        %v442 = vadd.f32 %v378, %v410
        %v443 = vadd.f32 %v379, %v411
        %v444 = vadd.f32 %v380, %v412
        %v445 = vadd.f32 %v381, %v413
        %v446 = vadd.f32 %v382, %v414
        %v447 = vadd.f32 %v383, %v415
        %v448 = vadd.f32 %v384, %v416
        %v449 = vadd.f32 %v385, %v417
        %v450 = vadd.f32 %v386, %v418
        %v451 = vadd.f32 %v387, %v419
        %v452 = vadd.f32 %v388, %v420
        %v453 = vadd.f32 %v389, %v421
        %v454 = vadd.f32 %v390, %v422
        %v455 = vadd.f32 %v391, %v423
        %v456 = vadd.f32 %v392, %v424
        %v457 = vadd.f32 %v393, %v425
        %v458 = vadd.f32 %v394, %v426
        %v459 = vadd.f32 %v395, %v427
        %v460 = vadd.f32 %v396, %v428
        %v461 = vadd.f32 %v397, %v429
        %v462 = vadd.f32 %v398, %v430
        %v463 = vadd.f32 %v399, %v431
        %v464 = vadd.f32 %v400, %v432
        %v465 = vadd.f32 %v401, %v433
        %v466 = vadd.f32 %v402, %v434
        %v467 = vadd.f32 %v403, %v435
        %v468 = vadd.f32 %v404, %v436
        %v469 = vadd.f32 %v405, %v437
        %v470 = vadd.f32 %v406, %v438
        %v471 = vadd.f32 %v407, %v439
        %v472 = vpack.c.bf16 %v441, %v440
        %v473 = vpack.c.bf16 %v443, %v442
        %v474 = vpack.c.bf16 %v445, %v444
        %v475 = vpack.c.bf16 %v447, %v446
        %v476 = vpack.c.bf16 %v449, %v448
        %v477 = vpack.c.bf16 %v451, %v450
        %v478 = vpack.c.bf16 %v453, %v452
        %v479 = vpack.c.bf16 %v455, %v454
        %v480 = vpack.c.bf16 %v457, %v456
        %v481 = vpack.c.bf16 %v459, %v458
        %v482 = vpack.c.bf16 %v461, %v460
        %v483 = vpack.c.bf16 %v463, %v462
        %v484 = vpack.c.bf16 %v465, %v464
        %v485 = vpack.c.bf16 %v467, %v466
        %v486 = vpack.c.bf16 %v469, %v468
        %v487 = vpack.c.bf16 %v471, %v470
        %v488 = vld [vmem:[#allocation7] sm:$0xf]
        %v489 = vld [vmem:[#allocation7 + $0x4] sm:$0xf]
        %v490 = vld [vmem:[#allocation7 + $0x8] sm:$0xf]
        %v491 = vld [vmem:[#allocation7 + $0xc] sm:$0xf]
        %v492 = vld [vmem:[#allocation7 + $0x10] sm:$0xf]
        %v493 = vld [vmem:[#allocation7 + $0x14] sm:$0xf]
        %v494 = vld [vmem:[#allocation7 + $0x18] sm:$0xf]
        %v495 = vld [vmem:[#allocation7 + $0x1c] sm:$0xf]
        %v496 = vld [vmem:[#allocation7 + $0x20] sm:$0xf]
        %v497 = vld [vmem:[#allocation7 + $0x24] sm:$0xf]
        %v498 = vld [vmem:[#allocation7 + $0x28] sm:$0xf]
        %v499 = vld [vmem:[#allocation7 + $0x2c] sm:$0xf]
        %v500 = vld [vmem:[#allocation7 + $0x30] sm:$0xf]
        %v501 = vld [vmem:[#allocation7 + $0x34] sm:$0xf]
        %v502 = vld [vmem:[#allocation7 + $0x38] sm:$0xf]
        %v503 = vld [vmem:[#allocation7 + $0x3c] sm:$0xf]
        %v504 = vld [vmem:[%s203] sm:$0xff]
        %v505 = vld [vmem:[%s203 + $0x8] sm:$0xff]
        %v506 = vld [vmem:[%s203 + $0x10] sm:$0xff]
        %v507 = vld [vmem:[%s203 + $0x18] sm:$0xff]
        %v508 = vld [vmem:[%s203 + $0x20] sm:$0xff]
        %v509 = vld [vmem:[%s203 + $0x28] sm:$0xff]
        %v510 = vld [vmem:[%s203 + $0x30] sm:$0xff]
        %v511 = vld [vmem:[%s203 + $0x38] sm:$0xff]
        %v512 = vld [vmem:[%s203 + $0x40] sm:$0xff]
        %v513 = vld [vmem:[%s203 + $0x48] sm:$0xff]
        %v514 = vld [vmem:[%s203 + $0x50] sm:$0xff]
        %v515 = vld [vmem:[%s203 + $0x58] sm:$0xff]
        %v516 = vld [vmem:[%s203 + $0x60] sm:$0xff]
        %v517 = vld [vmem:[%s203 + $0x68] sm:$0xff]
        %v518 = vld [vmem:[%s203 + $0x70] sm:$0xff]
        %v519 = vld [vmem:[%s203 + $0x78] sm:$0xff]
        %v520 = vld [vmem:[%s203 + $0x80] sm:$0xff]
        %v521 = vld [vmem:[%s203 + $0x88] sm:$0xff]
        %v522 = vld [vmem:[%s203 + $0x90] sm:$0xff]
        %v523 = vld [vmem:[%s203 + $0x98] sm:$0xff]
        %v524 = vld [vmem:[%s203 + $0xa0] sm:$0xff]
        %v525 = vld [vmem:[%s203 + $0xa8] sm:$0xff]
        %v526 = vld [vmem:[%s203 + $0xb0] sm:$0xff]
        %v527 = vld [vmem:[%s203 + $0xb8] sm:$0xff]
        %v528 = vld [vmem:[%s203 + $0xc0] sm:$0xff]
        %v529 = vld [vmem:[%s203 + $0xc8] sm:$0xff]
        %v530 = vld [vmem:[%s203 + $0xd0] sm:$0xff]
        %v531 = vld [vmem:[%s203 + $0xd8] sm:$0xff]
        %v532 = vld [vmem:[%s203 + $0xe0] sm:$0xff]
        %v533 = vld [vmem:[%s203 + $0xe8] sm:$0xff]
        %v534 = vld [vmem:[%s203 + $0xf0] sm:$0xff]
        %v535 = vld [vmem:[%s203 + $0xf8] sm:$0xff]
        %v536 = vpack.c.bf16 %v505, %v504
        %v537 = vpack.c.bf16 %v507, %v506
        %v538 = vpack.c.bf16 %v509, %v508
        %v539 = vpack.c.bf16 %v511, %v510
        %v540 = vpack.c.bf16 %v513, %v512
        %v541 = vpack.c.bf16 %v515, %v514
        %v542 = vpack.c.bf16 %v517, %v516
        %v543 = vpack.c.bf16 %v519, %v518
        %v544 = vpack.c.bf16 %v521, %v520
        %v545 = vpack.c.bf16 %v523, %v522
        %v546 = vpack.c.bf16 %v525, %v524
        %v547 = vpack.c.bf16 %v527, %v526
        %v548 = vpack.c.bf16 %v529, %v528
        %v549 = vpack.c.bf16 %v531, %v530
        %v550 = vpack.c.bf16 %v533, %v532
        %v551 = vpack.c.bf16 %v535, %v534
        %v552 = vld [vmem:[#allocation7 + $0x40] sm:$0xf]
        %v553 = vld [vmem:[#allocation7 + $0x44] sm:$0xf]
        %v554 = vld [vmem:[#allocation7 + $0x48] sm:$0xf]
        %v555 = vld [vmem:[#allocation7 + $0x4c] sm:$0xf]
        %v556 = vld [vmem:[#allocation7 + $0x50] sm:$0xf]
        %v557 = vld [vmem:[#allocation7 + $0x54] sm:$0xf]
        %v558 = vld [vmem:[#allocation7 + $0x58] sm:$0xf]
        %v559 = vld [vmem:[#allocation7 + $0x5c] sm:$0xf]
        %v560 = vld [vmem:[#allocation7 + $0x60] sm:$0xf]
        %v561 = vld [vmem:[#allocation7 + $0x64] sm:$0xf]
        %v562 = vld [vmem:[#allocation7 + $0x68] sm:$0xf]
        %v563 = vld [vmem:[#allocation7 + $0x6c] sm:$0xf]
        %v564 = vld [vmem:[#allocation7 + $0x70] sm:$0xf]
        %v565 = vld [vmem:[#allocation7 + $0x74] sm:$0xf]
        %v566 = vld [vmem:[#allocation7 + $0x78] sm:$0xf]
        %v567 = vld [vmem:[#allocation7 + $0x7c] sm:$0xf]
        %v584 = vunpack.c.l.b16 %v552
        %v585 = vunpack.c.l.b16 %v553
        %v586 = vunpack.c.l.b16 %v554
        %v587 = vunpack.c.l.b16 %v555
        %v588 = vunpack.c.l.b16 %v556
        %v589 = vunpack.c.l.b16 %v557
        %v590 = vunpack.c.l.b16 %v558
        %v591 = vunpack.c.l.b16 %v559
        %v592 = vunpack.c.l.b16 %v560
        %v593 = vunpack.c.l.b16 %v561
        %v594 = vunpack.c.l.b16 %v562
        %v595 = vunpack.c.l.b16 %v563
        %v596 = vunpack.c.l.b16 %v564
        %v597 = vunpack.c.l.b16 %v565
        %v598 = vunpack.c.l.b16 %v566
        %v599 = vunpack.c.l.b16 %v567
        %v600 = vpack.c.b16 %v585, %v584
        %v601 = vpack.c.b16 %v587, %v586
        %v602 = vpack.c.b16 %v589, %v588
        %v603 = vpack.c.b16 %v591, %v590
        %v604 = vpack.c.b16 %v593, %v592
        %v605 = vpack.c.b16 %v595, %v594
        %v606 = vpack.c.b16 %v597, %v596
        %v607 = vpack.c.b16 %v599, %v598
        %616 = vmatprep.subr.bf16.mxu0 0
        %617 = vmatpush1.bf16.msra.mxu0 %v600
        %618 = vmatprep.subr.bf16.mxu0 0
        %619 = vmatpush1.bf16.msra.mxu0 %v601
        %620 = vmatprep.subr.bf16.mxu0 0
        %621 = vmatpush1.bf16.msra.mxu0 %v602
        %622 = vmatprep.subr.bf16.mxu0 0
        %623 = vmatpush1.bf16.msra.mxu0 %v603
        %624 = vmatprep.subr.bf16.mxu0 0
        %625 = vmatpush1.bf16.msra.mxu0 %v604
        %626 = vmatprep.subr.bf16.mxu0 0
        %627 = vmatpush1.bf16.msra.mxu0 %v605
        %628 = vmatprep.subr.bf16.mxu0 0
        %629 = vmatpush1.bf16.msra.mxu0 %v606
        %630 = vmatprep.subr.bf16.mxu0 0
        %631 = vmatpush1.bf16.msra.mxu0 %v607
        %632 = vmatprep.subr.bf16.mxu0 0
        %633 = vmatpush1.bf16.msra.mxu0 0
        %634 = vmatprep.subr.bf16.mxu0 0
        %635 = vmatpush1.bf16.msra.mxu0 0
        %636 = vmatprep.subr.bf16.mxu0 0
        %637 = vmatpush1.bf16.msra.mxu0 0
        %638 = vmatprep.subr.bf16.mxu0 0
        %639 = vmatpush1.bf16.msra.mxu0 0
        %640 = vmatprep.subr.bf16.mxu0 0
        %641 = vmatpush1.bf16.msra.mxu0 0
        %642 = vmatprep.subr.bf16.mxu0 0
        %643 = vmatpush1.bf16.msra.mxu0 0
        %644 = vmatprep.subr.bf16.mxu0 0
        %645 = vmatpush1.bf16.msra.mxu0 0
        %646 = vmatprep.subr.bf16.mxu0 0
        %647 = vmatpush1.bf16.msra.mxu0 0
        %648 = vmatprep.mubr.bf16.mxu0 0
        %649 = vmatmul.mubr.bf16.gmra.mrb[0].mxu0 %v536
        %v650 = vpop.f32.mrb[0].mxu0
        %v651 = vadd.f32 0.0, %v650
        %v652 = vpop.f32.mrb[0].mxu0
        %v653 = vpop.f32.mrb[0].mxu0
        %v654 = vadd.f32 0.0, %v653
        %v655 = vpop.f32.mrb[0].mxu0
        %656 = vmatprep.mubr.bf16.mxu0 0
        %657 = vmatmul.mubr.bf16.gmra.mrb[0].mxu0 %v537
        %v658 = vpop.f32.mrb[0].mxu0
        %v659 = vadd.f32 0.0, %v658
        %v660 = vpop.f32.mrb[0].mxu0
        %v661 = vpop.f32.mrb[0].mxu0
        %v662 = vadd.f32 0.0, %v661
        %v663 = vpop.f32.mrb[0].mxu0
        %664 = vmatprep.mubr.bf16.mxu0 0
        %665 = vmatmul.mubr.bf16.gmra.mrb[0].mxu0 %v538
        %v666 = vpop.f32.mrb[0].mxu0
        %v667 = vadd.f32 0.0, %v666
        %v668 = vpop.f32.mrb[0].mxu0
        %v669 = vpop.f32.mrb[0].mxu0
        %v670 = vadd.f32 0.0, %v669
        %v671 = vpop.f32.mrb[0].mxu0
        %672 = vmatprep.mubr.bf16.mxu0 0
        %673 = vmatmul.mubr.bf16.gmra.mrb[0].mxu0 %v539
        %v674 = vpop.f32.mrb[0].mxu0
        %v675 = vadd.f32 0.0, %v674
        %v676 = vpop.f32.mrb[0].mxu0
        %v677 = vpop.f32.mrb[0].mxu0
        %v678 = vadd.f32 0.0, %v677
        %v679 = vpop.f32.mrb[0].mxu0
        %680 = vmatprep.mubr.bf16.mxu0 0
        %681 = vmatmul.mubr.bf16.gmra.mrb[0].mxu0 %v540
        %v682 = vpop.f32.mrb[0].mxu0
        %v683 = vadd.f32 0.0, %v682
        %v684 = vpop.f32.mrb[0].mxu0
        %v685 = vpop.f32.mrb[0].mxu0
        %v686 = vadd.f32 0.0, %v685
        %v687 = vpop.f32.mrb[0].mxu0
        %688 = vmatprep.mubr.bf16.mxu0 0
        %689 = vmatmul.mubr.bf16.gmra.mrb[0].mxu0 %v541
        %v690 = vpop.f32.mrb[0].mxu0
        %v691 = vadd.f32 0.0, %v690
        %v692 = vpop.f32.mrb[0].mxu0
        %v693 = vpop.f32.mrb[0].mxu0
        %v694 = vadd.f32 0.0, %v693
        %v695 = vpop.f32.mrb[0].mxu0
        %696 = vmatprep.mubr.bf16.mxu0 0
        %697 = vmatmul.mubr.bf16.gmra.mrb[0].mxu0 %v542
        %v698 = vpop.f32.mrb[0].mxu0
        %v699 = vadd.f32 0.0, %v698
        %v700 = vpop.f32.mrb[0].mxu0
        %v701 = vpop.f32.mrb[0].mxu0
        %v702 = vadd.f32 0.0, %v701
        %v703 = vpop.f32.mrb[0].mxu0
        %704 = vmatprep.mubr.bf16.mxu0 0
        %705 = vmatmul.mubr.bf16.gmra.mrb[0].mxu0 %v543
        %v706 = vpop.f32.mrb[0].mxu0
        %v707 = vadd.f32 0.0, %v706
        %v708 = vpop.f32.mrb[0].mxu0
        %v709 = vpop.f32.mrb[0].mxu0
        %v710 = vadd.f32 0.0, %v709
        %v711 = vpop.f32.mrb[0].mxu0
        %712 = vmatprep.mubr.bf16.mxu0 0
        %713 = vmatmul.mubr.bf16.gmra.mrb[0].mxu0 %v544
        %v714 = vpop.f32.mrb[0].mxu0
        %v715 = vadd.f32 0.0, %v714
        %v716 = vpop.f32.mrb[0].mxu0
        %v717 = vpop.f32.mrb[0].mxu0
        %v718 = vadd.f32 0.0, %v717
        %v719 = vpop.f32.mrb[0].mxu0
        %720 = vmatprep.mubr.bf16.mxu0 0
        %721 = vmatmul.mubr.bf16.gmra.mrb[0].mxu0 %v545
        %v722 = vpop.f32.mrb[0].mxu0
        %v723 = vadd.f32 0.0, %v722
        %v724 = vpop.f32.mrb[0].mxu0
        %v725 = vpop.f32.mrb[0].mxu0
        %v726 = vadd.f32 0.0, %v725
        %v727 = vpop.f32.mrb[0].mxu0
        %728 = vmatprep.mubr.bf16.mxu0 0
        %729 = vmatmul.mubr.bf16.gmra.mrb[0].mxu0 %v546
        %v730 = vpop.f32.mrb[0].mxu0
        %v731 = vadd.f32 0.0, %v730
        %v732 = vpop.f32.mrb[0].mxu0
        %v733 = vpop.f32.mrb[0].mxu0
        %v734 = vadd.f32 0.0, %v733
        %v735 = vpop.f32.mrb[0].mxu0
        %736 = vmatprep.mubr.bf16.mxu0 0
        %737 = vmatmul.mubr.bf16.gmra.mrb[0].mxu0 %v547
        %v738 = vpop.f32.mrb[0].mxu0
        %v739 = vadd.f32 0.0, %v738
        %v740 = vpop.f32.mrb[0].mxu0
        %v741 = vpop.f32.mrb[0].mxu0
        %v742 = vadd.f32 0.0, %v741
        %v743 = vpop.f32.mrb[0].mxu0
        %744 = vmatprep.mubr.bf16.mxu0 0
        %745 = vmatmul.mubr.bf16.gmra.mrb[0].mxu0 %v548
        %v746 = vpop.f32.mrb[0].mxu0
        %v747 = vadd.f32 0.0, %v746
        %v748 = vpop.f32.mrb[0].mxu0
        %v749 = vpop.f32.mrb[0].mxu0
        %v750 = vadd.f32 0.0, %v749
        %v751 = vpop.f32.mrb[0].mxu0
        %752 = vmatprep.mubr.bf16.mxu0 0
        %753 = vmatmul.mubr.bf16.gmra.mrb[0].mxu0 %v549
        %v754 = vpop.f32.mrb[0].mxu0
        %v755 = vadd.f32 0.0, %v754
        %v756 = vpop.f32.mrb[0].mxu0
        %v757 = vpop.f32.mrb[0].mxu0
        %v758 = vadd.f32 0.0, %v757
        %v759 = vpop.f32.mrb[0].mxu0
        %760 = vmatprep.mubr.bf16.mxu0 0
        %761 = vmatmul.mubr.bf16.gmra.mrb[0].mxu0 %v550
        %v762 = vpop.f32.mrb[0].mxu0
        %v763 = vadd.f32 0.0, %v762
        %v764 = vpop.f32.mrb[0].mxu0
        %v765 = vpop.f32.mrb[0].mxu0
        %v766 = vadd.f32 0.0, %v765
        %v767 = vpop.f32.mrb[0].mxu0
        %768 = vmatprep.mubr.bf16.mxu0 0
        %769 = vmatmul.mubr.bf16.gmra.mrb[0].mxu0 %v551
        %v770 = vpop.f32.mrb[0].mxu0
        %v771 = vadd.f32 0.0, %v770
        %v772 = vpop.f32.mrb[0].mxu0
        %v773 = vpop.f32.mrb[0].mxu0
        %v774 = vadd.f32 0.0, %v773
        %v775 = vpop.f32.mrb[0].mxu0
        %776 = vdwg.mxu0
        %v793 = vunpack.c.l.b16 %v488
        %v794 = vunpack.c.l.b16 %v489
        %v795 = vunpack.c.l.b16 %v490
        %v796 = vunpack.c.l.b16 %v491
        %v797 = vunpack.c.l.b16 %v492
        %v798 = vunpack.c.l.b16 %v493
        %v799 = vunpack.c.l.b16 %v494
        %v800 = vunpack.c.l.b16 %v495
        %v801 = vunpack.c.l.b16 %v496
        %v802 = vunpack.c.l.b16 %v497
        %v803 = vunpack.c.l.b16 %v498
        %v804 = vunpack.c.l.b16 %v499
        %v805 = vunpack.c.l.b16 %v500
        %v806 = vunpack.c.l.b16 %v501
        %v807 = vunpack.c.l.b16 %v502
        %v808 = vunpack.c.l.b16 %v503
        %v809 = vpack.c.b16 %v794, %v793
        %v810 = vpack.c.b16 %v796, %v795
        %v811 = vpack.c.b16 %v798, %v797
        %v812 = vpack.c.b16 %v800, %v799
        %v813 = vpack.c.b16 %v802, %v801
        %v814 = vpack.c.b16 %v804, %v803
        %v815 = vpack.c.b16 %v806, %v805
        %v816 = vpack.c.b16 %v808, %v807
        %825 = vmatprep.subr.bf16.mxu0 0
        %826 = vmatpush1.bf16.msra.mxu0 %v809
        %827 = vmatprep.subr.bf16.mxu0 0
        %828 = vmatpush1.bf16.msra.mxu0 %v810
        %829 = vmatprep.subr.bf16.mxu0 0
        %830 = vmatpush1.bf16.msra.mxu0 %v811
        %831 = vmatprep.subr.bf16.mxu0 0
        %832 = vmatpush1.bf16.msra.mxu0 %v812
        %833 = vmatprep.subr.bf16.mxu0 0
        %834 = vmatpush1.bf16.msra.mxu0 %v813
        %835 = vmatprep.subr.bf16.mxu0 0
        %836 = vmatpush1.bf16.msra.mxu0 %v814
        %837 = vmatprep.subr.bf16.mxu0 0
        %838 = vmatpush1.bf16.msra.mxu0 %v815
        %839 = vmatprep.subr.bf16.mxu0 0
        %840 = vmatpush1.bf16.msra.mxu0 %v816
        %841 = vmatprep.subr.bf16.mxu0 0
        %842 = vmatpush1.bf16.msra.mxu0 0
        %843 = vmatprep.subr.bf16.mxu0 0
        %844 = vmatpush1.bf16.msra.mxu0 0
        %845 = vmatprep.subr.bf16.mxu0 0
        %846 = vmatpush1.bf16.msra.mxu0 0
        %847 = vmatprep.subr.bf16.mxu0 0
        %848 = vmatpush1.bf16.msra.mxu0 0
        %849 = vmatprep.subr.bf16.mxu0 0
        %850 = vmatpush1.bf16.msra.mxu0 0
        %851 = vmatprep.subr.bf16.mxu0 0
        %852 = vmatpush1.bf16.msra.mxu0 0
        %853 = vmatprep.subr.bf16.mxu0 0
        %854 = vmatpush1.bf16.msra.mxu0 0
        %855 = vmatprep.subr.bf16.mxu0 0
        %856 = vmatpush1.bf16.msra.mxu0 0
        %857 = vmatprep.mubr.bf16.mxu0 0
        %858 = vmatmul.mubr.bf16.gmra.mrb[0].mxu0 %v472
        %v859 = vpop.f32.mrb[0].mxu0
        %v860 = vadd.f32 %v651, %v859
        %v861 = vpop.f32.mrb[0].mxu0
        %v862 = vpop.f32.mrb[0].mxu0
        %v863 = vadd.f32 %v654, %v862
        %v864 = vpop.f32.mrb[0].mxu0
        %865 = vmatprep.mubr.bf16.mxu0 0
        %866 = vmatmul.mubr.bf16.gmra.mrb[0].mxu0 %v473
        %v867 = vpop.f32.mrb[0].mxu0
        %v868 = vadd.f32 %v659, %v867
        %v869 = vpop.f32.mrb[0].mxu0
        %v870 = vpop.f32.mrb[0].mxu0
        %v871 = vadd.f32 %v662, %v870
        %v872 = vpop.f32.mrb[0].mxu0
        %873 = vmatprep.mubr.bf16.mxu0 0
        %874 = vmatmul.mubr.bf16.gmra.mrb[0].mxu0 %v474
        %v875 = vpop.f32.mrb[0].mxu0
        %v876 = vadd.f32 %v667, %v875
        %v877 = vpop.f32.mrb[0].mxu0
        %v878 = vpop.f32.mrb[0].mxu0
        %v879 = vadd.f32 %v670, %v878
        %v880 = vpop.f32.mrb[0].mxu0
        %881 = vmatprep.mubr.bf16.mxu0 0
        %882 = vmatmul.mubr.bf16.gmra.mrb[0].mxu0 %v475
        %v883 = vpop.f32.mrb[0].mxu0
        %v884 = vadd.f32 %v675, %v883
        %v885 = vpop.f32.mrb[0].mxu0
        %v886 = vpop.f32.mrb[0].mxu0
        %v887 = vadd.f32 %v678, %v886
        %v888 = vpop.f32.mrb[0].mxu0
        %889 = vmatprep.mubr.bf16.mxu0 0
        %890 = vmatmul.mubr.bf16.gmra.mrb[0].mxu0 %v476
        %v891 = vpop.f32.mrb[0].mxu0
        %v892 = vadd.f32 %v683, %v891
        %v893 = vpop.f32.mrb[0].mxu0
        %v894 = vpop.f32.mrb[0].mxu0
        %v895 = vadd.f32 %v686, %v894
        %v896 = vpop.f32.mrb[0].mxu0
        %897 = vmatprep.mubr.bf16.mxu0 0
        %898 = vmatmul.mubr.bf16.gmra.mrb[0].mxu0 %v477
        %v899 = vpop.f32.mrb[0].mxu0
        %v900 = vadd.f32 %v691, %v899
        %v901 = vpop.f32.mrb[0].mxu0
        %v902 = vpop.f32.mrb[0].mxu0
        %v903 = vadd.f32 %v694, %v902
        %v904 = vpop.f32.mrb[0].mxu0
        %905 = vmatprep.mubr.bf16.mxu0 0
        %906 = vmatmul.mubr.bf16.gmra.mrb[0].mxu0 %v478
        %v907 = vpop.f32.mrb[0].mxu0
        %v908 = vadd.f32 %v699, %v907
        %v909 = vpop.f32.mrb[0].mxu0
        %v910 = vpop.f32.mrb[0].mxu0
        %v911 = vadd.f32 %v702, %v910
        %v912 = vpop.f32.mrb[0].mxu0
        %913 = vmatprep.mubr.bf16.mxu0 0
        %914 = vmatmul.mubr.bf16.gmra.mrb[0].mxu0 %v479
        %v915 = vpop.f32.mrb[0].mxu0
        %v916 = vadd.f32 %v707, %v915
        %v917 = vpop.f32.mrb[0].mxu0
        %v918 = vpop.f32.mrb[0].mxu0
        %v919 = vadd.f32 %v710, %v918
        %v920 = vpop.f32.mrb[0].mxu0
        %921 = vmatprep.mubr.bf16.mxu0 0
        %922 = vmatmul.mubr.bf16.gmra.mrb[0].mxu0 %v480
        %v923 = vpop.f32.mrb[0].mxu0
        %v924 = vadd.f32 %v715, %v923
        %v925 = vpop.f32.mrb[0].mxu0
        %v926 = vpop.f32.mrb[0].mxu0
        %v927 = vadd.f32 %v718, %v926
        %v928 = vpop.f32.mrb[0].mxu0
        %929 = vmatprep.mubr.bf16.mxu0 0
        %930 = vmatmul.mubr.bf16.gmra.mrb[0].mxu0 %v481
        %v931 = vpop.f32.mrb[0].mxu0
        %v932 = vadd.f32 %v723, %v931
        %v933 = vpop.f32.mrb[0].mxu0
        %v934 = vpop.f32.mrb[0].mxu0
        %v935 = vadd.f32 %v726, %v934
        %v936 = vpop.f32.mrb[0].mxu0
        %937 = vmatprep.mubr.bf16.mxu0 0
        %938 = vmatmul.mubr.bf16.gmra.mrb[0].mxu0 %v482
        %v939 = vpop.f32.mrb[0].mxu0
        %v940 = vadd.f32 %v731, %v939
        %v941 = vpop.f32.mrb[0].mxu0
        %v942 = vpop.f32.mrb[0].mxu0
        %v943 = vadd.f32 %v734, %v942
        %v944 = vpop.f32.mrb[0].mxu0
        %945 = vmatprep.mubr.bf16.mxu0 0
        %946 = vmatmul.mubr.bf16.gmra.mrb[0].mxu0 %v483
        %v947 = vpop.f32.mrb[0].mxu0
        %v948 = vadd.f32 %v739, %v947
        %v949 = vpop.f32.mrb[0].mxu0
        %v950 = vpop.f32.mrb[0].mxu0
        %v951 = vadd.f32 %v742, %v950
        %v952 = vpop.f32.mrb[0].mxu0
        %953 = vmatprep.mubr.bf16.mxu0 0
        %954 = vmatmul.mubr.bf16.gmra.mrb[0].mxu0 %v484
        %v955 = vpop.f32.mrb[0].mxu0
        %v956 = vadd.f32 %v747, %v955
        %v957 = vpop.f32.mrb[0].mxu0
        %v958 = vpop.f32.mrb[0].mxu0
        %v959 = vadd.f32 %v750, %v958
        %v960 = vpop.f32.mrb[0].mxu0
        %961 = vmatprep.mubr.bf16.mxu0 0
        %962 = vmatmul.mubr.bf16.gmra.mrb[0].mxu0 %v485
        %v963 = vpop.f32.mrb[0].mxu0
        %v964 = vadd.f32 %v755, %v963
        %v965 = vpop.f32.mrb[0].mxu0
        %v966 = vpop.f32.mrb[0].mxu0
        %v967 = vadd.f32 %v758, %v966
        %v968 = vpop.f32.mrb[0].mxu0
        %969 = vmatprep.mubr.bf16.mxu0 0
        %970 = vmatmul.mubr.bf16.gmra.mrb[0].mxu0 %v486
        %v971 = vpop.f32.mrb[0].mxu0
        %v972 = vadd.f32 %v763, %v971
        %v973 = vpop.f32.mrb[0].mxu0
        %v974 = vpop.f32.mrb[0].mxu0
        %v975 = vadd.f32 %v766, %v974
        %v976 = vpop.f32.mrb[0].mxu0
        %977 = vmatprep.mubr.bf16.mxu0 0
        %978 = vmatmul.mubr.bf16.gmra.mrb[0].mxu0 %v487
        %v979 = vpop.f32.mrb[0].mxu0
        %v980 = vadd.f32 %v771, %v979
        %v981 = vpop.f32.mrb[0].mxu0
        %v982 = vpop.f32.mrb[0].mxu0
        %v983 = vadd.f32 %v774, %v982
        %v984 = vpop.f32.mrb[0].mxu0
        %985 = vdwg.mxu0
        %v986 = vmax.f32 %v860, 0.0
        %v987 = vmax.f32 %v863, 0.0
        %v988 = vmax.f32 %v868, 0.0
        %v989 = vmax.f32 %v871, 0.0
        %v990 = vmax.f32 %v876, 0.0
        %v991 = vmax.f32 %v879, 0.0
        %v992 = vmax.f32 %v884, 0.0
        %v993 = vmax.f32 %v887, 0.0
        %v994 = vmax.f32 %v892, 0.0
        %v995 = vmax.f32 %v895, 0.0
        %v996 = vmax.f32 %v900, 0.0
        %v997 = vmax.f32 %v903, 0.0
        %v998 = vmax.f32 %v908, 0.0
        %v999 = vmax.f32 %v911, 0.0
        %v1000 = vmax.f32 %v916, 0.0
        %v1001 = vmax.f32 %v919, 0.0
        %v1002 = vmax.f32 %v924, 0.0
        %v1003 = vmax.f32 %v927, 0.0
        %v1004 = vmax.f32 %v932, 0.0
        %v1005 = vmax.f32 %v935, 0.0
        %v1006 = vmax.f32 %v940, 0.0
        %v1007 = vmax.f32 %v943, 0.0
        %v1008 = vmax.f32 %v948, 0.0
        %v1009 = vmax.f32 %v951, 0.0
        %v1010 = vmax.f32 %v956, 0.0
        %v1011 = vmax.f32 %v959, 0.0
        %v1012 = vmax.f32 %v964, 0.0
        %v1013 = vmax.f32 %v967, 0.0
        %v1014 = vmax.f32 %v972, 0.0
        %v1015 = vmax.f32 %v975, 0.0
        %v1016 = vmax.f32 %v980, 0.0
        %v1017 = vmax.f32 %v983, 0.0
        %1018 = vst [vmem:[%s243] sm:$0xff] %v986
        %1019 = vst [vmem:[%s243 + $0x8] sm:$0xff] %v987
        %1020 = vst [vmem:[%s243 + $0x10] sm:$0xff] %v988
        %1021 = vst [vmem:[%s243 + $0x18] sm:$0xff] %v989
        %1022 = vst [vmem:[%s243 + $0x20] sm:$0xff] %v990
        %1023 = vst [vmem:[%s243 + $0x28] sm:$0xff] %v991
        %1024 = vst [vmem:[%s243 + $0x30] sm:$0xff] %v992
        %1025 = vst [vmem:[%s243 + $0x38] sm:$0xff] %v993
        %1026 = vst [vmem:[%s243 + $0x40] sm:$0xff] %v994
        %1027 = vst [vmem:[%s243 + $0x48] sm:$0xff] %v995
        %1028 = vst [vmem:[%s243 + $0x50] sm:$0xff] %v996
        %1029 = vst [vmem:[%s243 + $0x58] sm:$0xff] %v997
        %1030 = vst [vmem:[%s243 + $0x60] sm:$0xff] %v998
        %1031 = vst [vmem:[%s243 + $0x68] sm:$0xff] %v999
        %1032 = vst [vmem:[%s243 + $0x70] sm:$0xff] %v1000
        %1033 = vst [vmem:[%s243 + $0x78] sm:$0xff] %v1001
        %1034 = vst [vmem:[%s243 + $0x80] sm:$0xff] %v1002
        %1035 = vst [vmem:[%s243 + $0x88] sm:$0xff] %v1003
        %1036 = vst [vmem:[%s243 + $0x90] sm:$0xff] %v1004
        %1037 = vst [vmem:[%s243 + $0x98] sm:$0xff] %v1005
        %1038 = vst [vmem:[%s243 + $0xa0] sm:$0xff] %v1006
        %1039 = vst [vmem:[%s243 + $0xa8] sm:$0xff] %v1007
        %1040 = vst [vmem:[%s243 + $0xb0] sm:$0xff] %v1008
        %1041 = vst [vmem:[%s243 + $0xb8] sm:$0xff] %v1009
        %1042 = vst [vmem:[%s243 + $0xc0] sm:$0xff] %v1010
        %1043 = vst [vmem:[%s243 + $0xc8] sm:$0xff] %v1011
        %1044 = vst [vmem:[%s243 + $0xd0] sm:$0xff] %v1012
        %1045 = vst [vmem:[%s243 + $0xd8] sm:$0xff] %v1013
        %1046 = vst [vmem:[%s243 + $0xe0] sm:$0xff] %v1014
        %1047 = vst [vmem:[%s243 + $0xe8] sm:$0xff] %v1015
        %1048 = vst [vmem:[%s243 + $0xf0] sm:$0xff] %v1016
        %1049 = vst [vmem:[%s243 + $0xf8] sm:$0xff] %v1017
        %s1050 = sand.u32 %s104, 1
        %s1051 = scalar_lea.sflag [#allocation4], %s1050
        %s1052 = sand.u32 %s104, 1
        %s1053 = smul.addr %s1052, 256
        %s1054 = scalar_lea.vmem [#allocation8], %s1053
        // Predicated region
        $region45: #{tpu_custom_call.1} parent=31 // pred_check
          %p1055 = pneg %p114
        $region46: #{tpu_custom_call.1} parent=31 // pred_check_branch
          %1057 = sbr.rel (%p1055) target = $region48
        $region47: #{tpu_custom_call.1} parent=31 // pred_region
          %s1058 = smul.u32 32, %s23
          %s1060 = ssub.s32 4096, 4096
          %1061 = vsyncadd %s1051, %s1060
          %s1062 = smul.addr %s1058, 128
          %s1063 = scalar_lea.hbm %s3, %s1062
          %s1064 = sshll.u32 %s1054, 4
          %s1065 = int_to_ptr.vmem [resolvable:$true] %s1064
          %1070 = dma.vmem_to_hbm [thread:$0]  %s1065, 4096, %s1063, %s1051, 128, 128, 8
        $region48: #{tpu_custom_call.1} parent=31 // pred_fallthru
          _
      $region32: #{tpu_custom_call.1} parent=5 // pred_fallthru
        _
      %p1071 = scmp.le.s32.totalorder 2, %s18
      // Predicated region
      $region49: #{tpu_custom_call.1} parent=5 // pred_check
        %p1072 = pneg %p1071
      $region50: #{tpu_custom_call.1} parent=5 // pred_check_branch
        %1074 = sbr.rel (%p1072) target = $region52
      $region51: #{tpu_custom_call.1} parent=5 // pred_region
        %s1075 = ssub.s32 %s18, 2
        // Predicated region
        $region53: #{tpu_custom_call.1} parent=51 // pred_check
          %p1076 = pneg %p120
        $region54: #{tpu_custom_call.1} parent=51 // pred_check_branch
          %1078 = sbr.rel (%p1076) target = $region56
        $region55: #{tpu_custom_call.1} parent=51 // pred_region
          %s1079 = sand.u32 %s105, 1
          %s1080 = scalar_lea.sflag [#allocation4], %s1079
          %s1081 = sand.u32 %s105, 1
          %s1082 = smul.addr %s1081, 256
          %s1083 = scalar_lea.vmem [#allocation8], %s1082
          %1084 = dma.done %s1080, 4096
        $region56: #{tpu_custom_call.1} parent=51 // pred_fallthru
          _
      $region52: #{tpu_custom_call.1} parent=5 // pred_fallthru
        _
    $region6: #{tpu_custom_call.1} parent=1 // loop_footer
      %s22 = sadd.s32 1, %s18
    $region7: #{tpu_custom_call.1} parent=1 // loop_footer_branch
      %17 = sbr.rel target = $region3
    $region8: #{tpu_custom_call.1} parent=1 // loop_exit
      _
    %1085 = vsyncpa [#allocation3], 1
    %s1086 = scalar_lea.sflag [#allocation3], 1
    %1087 = vsyncpa %s1086, 1
    %1088 = vsyncpa [#allocation6], 1
    %s1089 = scalar_lea.sflag [#allocation6], 1
    %1090 = vsyncpa %s1089, 1
    %1091 = vsyncpa [#allocation4], 1
    %s1092 = scalar_lea.sflag [#allocation4], 1
    %1093 = vsyncpa %s1092, 1

</llo_original>
